<compile_context>
chip_gen: v7x
topology: tpu7x:2x2x1
jax: 0.10.0
libtpu: 0.0.40
codegen_flags: <defaults>
</compile_context>

<pallas_src>
import functools

import jax
import jax.numpy as jnp
from jax.experimental import pallas as pl
from jax.experimental.pallas import tpu as pltpu

LANES = 128                   # vreg lane width
NOISE_FACTOR = 0.4
BLOCK_ROWS = 4096             # (4096, 128) f32 block = 2 MiB per grid step
NUM_CORES = 2                 # leading "parallel" axis for pass-1 (v7x megacore)

_VMEM_CAP_CACHE = None


def _vmem_capacity_bytes():
    """Per-core VMEM capacity; conservative 64 MiB fallback (v7x physical)."""
    global _VMEM_CAP_CACHE
    if _VMEM_CAP_CACHE is None:
        cap = 64 * 1024 * 1024
        try:
            got = int(pltpu.get_tpu_info().vmem_capacity_bytes)
            if got > 0:
                cap = got
        except Exception:
            pass
        _VMEM_CAP_CACHE = cap
    return _VMEM_CAP_CACHE


# ---------------------------------------------------------------------------
# Fused single-pass kernel: whole slab resident in VMEM.
# ---------------------------------------------------------------------------
def _fused_kernel(x_ref, noise_ref, o_ref, *, n_elems):
    x = x_ref[...].astype(jnp.float32)
    inv = jax.lax.rsqrt(jnp.sum(x * x) / jnp.float32(n_elems))
    o_ref[...] = (x * inv
                  + noise_ref[...].astype(jnp.float32)
                  * jnp.float32(NOISE_FACTOR)).astype(o_ref.dtype)


# ---------------------------------------------------------------------------
# Two-pass path for large tensors.
# ---------------------------------------------------------------------------
def _sumsq_kernel(x_ref, part_ref, acc_ref, *, n_rows, block_rows):
    """Pass 1: per-core partial sum(x^2).

    Grid is (NUM_CORES, blocks_per_core); core axis is "parallel".  The
    global block index is c*blocks_per_core + j; the wrapper's index_map
    clamps it so overhanging blocks re-read the last real block (their
    contribution is masked to zero here).  Accumulator is a single (1,128)
    vreg row; the masked-tail branch only runs for blocks that overhang the
    true row extent, so steady-state work is just mul + add per vreg.
    """
    c = pl.program_id(0)
    j = pl.program_id(1)
    nbpc = pl.num_programs(1)

    @pl.when(j == 0)
    def _():
        acc_ref[...] = jnp.zeros_like(acc_ref)

    blk = c * nbpc + j                  # un-clamped global block index
    row0 = blk * block_rows
    x = x_ref[...].astype(jnp.float32)

    @pl.when(row0 + block_rows <= n_rows)          # steady state: no mask work
    def _():
        acc_ref[...] += jnp.sum(x * x, axis=0, keepdims=True)

    @pl.when(row0 + block_rows > n_rows)           # tail / overhang blocks only
    def _():
        rid = row0 + jax.lax.broadcasted_iota(jnp.int32, x.shape, 0)
        xm = jnp.where(rid < n_rows, x, jnp.float32(0.0))
        acc_ref[...] += jnp.sum(xm * xm, axis=0, keepdims=True)

    @pl.when(j == nbpc - 1)
    def _():
        # Splat this core's partial sum into its (1, 8, 128) output block.
        part_ref[...] = jnp.broadcast_to(jnp.sum(acc_ref[...]), (1, 8, LANES))


def _normalize_add_noise_kernel(inv_ref, x_ref, noise_ref, o_ref):
    """Pass 2: out = x * inv_scale + noise * 0.4 (pure FMA, streamed)."""
    inv = inv_ref[0, 0]
    o_ref[...] = (x_ref[...].astype(jnp.float32) * inv
                  + noise_ref[...].astype(jnp.float32)
                  * jnp.float32(NOISE_FACTOR)).astype(o_ref.dtype)


# ---------------------------------------------------------------------------
# Wrapper
# ---------------------------------------------------------------------------
def add_noise_forward(x, noise, *, force_two_pass=False):
    """Equivalent of add_noise.forward(input) with pre-drawn gaussian noise."""
    orig_shape = x.shape
    dtype = x.dtype
    n_elems = x.size

    xf = x.reshape(-1)          # free (contiguous reshape) - no dtype cast
    nf = noise.reshape(-1)

    pad = (-n_elems) % LANES
    if pad:
        # TODO(synk): handle the sub-128 tail in-kernel (lane mask in the last
        # block) instead of this full-tensor pad copy; only matters for large
        # ragged inputs.  Zeros contribute nothing to sum(x^2); the mean
        # divides by the true element count.
        xf = jnp.pad(xf, (0, pad))
        nf = jnp.pad(nf, (0, pad))
    rows = xf.size // LANES
    x2 = xf.reshape(rows, LANES)
    n2 = nf.reshape(rows, LANES)

    itemsize = jnp.dtype(dtype).itemsize
    slab_bytes = rows * LANES * itemsize
    # Fused-path VMEM estimate: x/noise/out buffers in the original dtype plus
    # ~two whole-slab f32 temporaries created by the in-kernel astype / math.
    fused_vmem_est = 3 * slab_bytes + 2 * rows * LANES * 4
    vmem_cap = _vmem_capacity_bytes()

    if (not force_two_pass) and fused_vmem_est <= vmem_cap // 2:
        # --- fused single-pass path: x + noise + out live in VMEM at once ---
        out2 = pl.pallas_call(
            functools.partial(_fused_kernel, n_elems=n_elems),
            out_shape=jax.ShapeDtypeStruct((rows, LANES), dtype),
            compiler_params=pltpu.CompilerParams(
                vmem_limit_bytes=(vmem_cap * 3) // 4),
        )(x2, n2)
    else:
        # --- two-pass path with 2 MiB blocks ---
        block_rows = BLOCK_ROWS
        nblocks = pl.cdiv(rows, block_rows)
        bpc = pl.cdiv(nblocks, NUM_CORES)       # blocks per (virtual) core

        # Pass 1: core-sharded global reduction -> per-core partial sums.
        partials = pl.pallas_call(
            functools.partial(_sumsq_kernel, n_rows=rows,
                              block_rows=block_rows),
            out_shape=jax.ShapeDtypeStruct((NUM_CORES, 8, LANES), jnp.float32),
            grid_spec=pltpu.PrefetchScalarGridSpec(
                num_scalar_prefetch=0,
                grid=(NUM_CORES, bpc),
                in_specs=[pl.BlockSpec(
                    (block_rows, LANES),
                    # Clamp overhanging global block indices so the DMA stays
                    # in-bounds; the kernel masks their contribution to zero.
                    lambda c, j: (jnp.minimum(c * bpc + j, nblocks - 1), 0))],
                out_specs=pl.BlockSpec((1, 8, LANES), lambda c, j: (c, 0, 0)),
                scratch_shapes=[pltpu.VMEM((1, LANES), jnp.float32)],
            ),
            compiler_params=pltpu.CompilerParams(
                dimension_semantics=("parallel", "arbitrary"),
                vmem_limit_bytes=32 * 1024 * 1024),
        )(x2)

        # Tiny glue op: combine per-core partials -> inv_scale = rsqrt(mean).
        total = jnp.sum(partials[:, 0, 0])
        inv_scale = jax.lax.rsqrt(total / jnp.float32(n_elems)).reshape(1, 1)

        # Pass 2: streamed elementwise normalize + add scaled noise.
        out2 = pl.pallas_call(
            _normalize_add_noise_kernel,
            out_shape=jax.ShapeDtypeStruct((rows, LANES), dtype),
            grid_spec=pltpu.PrefetchScalarGridSpec(
                num_scalar_prefetch=0,
                grid=(nblocks,),
                in_specs=[
                    pl.BlockSpec(memory_space=pltpu.MemorySpace.SMEM),    # inv
                    pl.BlockSpec((block_rows, LANES), lambda i: (i, 0)),  # x
                    pl.BlockSpec((block_rows, LANES), lambda i: (i, 0)),  # noise
                ],
                out_specs=pl.BlockSpec((block_rows, LANES), lambda i: (i, 0)),
            ),
            compiler_params=pltpu.CompilerParams(
                dimension_semantics=("parallel",),
                vmem_limit_bytes=32 * 1024 * 1024),
        )(inv_scale, x2, n2)

    out_flat = out2.reshape(-1)
    if pad:
        out_flat = out_flat[:n_elems]
    return out_flat.reshape(orig_shape)


# ---------------------------------------------------------------------------
# Self-test
# ---------------------------------------------------------------------------
def _reference(x, noise):
    xf = x.astype(jnp.float32)
    pwr = jnp.mean(xf ** 2)
    return (xf / jnp.sqrt(pwr)
            + noise.astype(jnp.float32) * NOISE_FACTOR).astype(x.dtype)


def _check(x, noise, **kw):
    out = jax.block_until_ready(add_noise_forward(x, noise, **kw))
    ref = _reference(x, noise)
    assert out.shape == x.shape and out.dtype == x.dtype
    assert jnp.allclose(out, ref, atol=2e-5, rtol=2e-5), "mismatch vs reference"


if __name__ == "__main__":
    key = jax.random.PRNGKey(0)
    std = 0.1

    # 1) Module-scale input (fused VMEM-resident path).
    k1, k2, key = jax.random.split(key, 3)
    x = jax.random.normal(k1, (2, 4, 16, 16), dtype=jnp.float32)
    noise = jax.random.normal(k2, x.shape, dtype=jnp.float32) * std
    _check(x, noise)

    # 2) Two-pass tiled path: 2 blocks, one per core, masked tail block.
    k1, k2, key = jax.random.split(key, 3)
    xl = jax.random.normal(k1, (4, 16, 95, 128), dtype=jnp.float32)
    nl = jax.random.normal(k2, xl.shape, dtype=jnp.float32) * std
    _check(xl, nl, force_two_pass=True)

    # 3) Two-pass path with odd block count (exercises the clamped /
    #    fully-masked overhang block on the second core).
    k1, k2, key = jax.random.split(key, 3)
    xo = jax.random.normal(k1, (68, 128, 128), dtype=jnp.float32)
    no = jax.random.normal(k2, xo.shape, dtype=jnp.float32) * std
    _check(xo, no, force_two_pass=True)

    # 4) Ragged size (not a multiple of 128 -> pad fallback).
    k1, k2, key = jax.random.split(key, 3)
    xr = jax.random.normal(k1, (2, 3, 5, 7), dtype=jnp.float32)
    nr = jax.random.normal(k2, xr.shape, dtype=jnp.float32) * std
    _check(xr, nr)

    print("KERNEL_OK")
</pallas_src>

<mosaic_0001>
module attributes {stable_mosaic.version = 11 : i64} {
  func.func @_fused_kernel(%arg0: memref<16x128xf32, #tpu.memory_space<vmem>>, %arg1: memref<16x128xf32, #tpu.memory_space<vmem>>, %arg2: memref<16x128xf32, #tpu.memory_space<vmem>>) attributes {dimension_semantics = [], scalar_prefetch = 0 : i64, scratch_operands = 0 : i64, tpu.core_type = #tpu.core_type<tc>} {
    %c0 = arith.constant 0 : index
    %c0_0 = arith.constant 0 : index
    %0 = vector.load %arg0[%c0, %c0_0] : memref<16x128xf32, #tpu.memory_space<vmem>>, vector<16x128xf32>
    %1 = arith.mulf %0, %0 : vector<16x128xf32>
    %2 = vector.shape_cast %1 : vector<16x128xf32> to vector<1x16x128xf32>
    %cst = arith.constant dense<0.000000e+00> : vector<1xf32>
    %3 = vector.multi_reduction <add>, %2, %cst [1, 2] : vector<1x16x128xf32> to vector<1xf32>
    %4 = vector.shape_cast %3 : vector<1xf32> to vector<1x1x1xf32>
    %5 = vector.extract %4[0, 0, 0] : f32 from vector<1x1x1xf32>
    %cst_1 = arith.constant 2.048000e+03 : f32
    %6 = arith.divf %5, %cst_1 : f32
    %7 = math.rsqrt %6 : f32
    %8 = vector.broadcast %7 : f32 to vector<16x128xf32>
    %9 = arith.mulf %0, %8 : vector<16x128xf32>
    %c0_2 = arith.constant 0 : index
    %c0_3 = arith.constant 0 : index
    %10 = vector.load %arg1[%c0_2, %c0_3] : memref<16x128xf32, #tpu.memory_space<vmem>>, vector<16x128xf32>
    %cst_4 = arith.constant 4.000000e-01 : f32
    %11 = vector.broadcast %cst_4 : f32 to vector<16x128xf32>
    %12 = arith.mulf %10, %11 : vector<16x128xf32>
    %13 = arith.addf %9, %12 : vector<16x128xf32>
    %c0_5 = arith.constant 0 : index
    %c0_6 = arith.constant 0 : index
    %14 = vector.load %arg2[%c0_5, %c0_6] : memref<16x128xf32, #tpu.memory_space<vmem>>, vector<16x128xf32>
    tpu.vector_store %arg2[%c0_5, %c0_6], %13 {strides = array<i32>} : memref<16x128xf32, #tpu.memory_space<vmem>>, vector<16x128xf32>,
    return
  }
}

</mosaic_0001>

<llo_original>
// kernel: tpu_custom_call.1
$region0: #{tpu_custom_call.1}
  #allocation0 [shape = 'u32[]', space=smem, size = 0x4, offset = 0x4, fixed_abs, tag = 'smem constant byte address 0x4 - core index']
  #allocation1 [shape = 'u32[144,128]{1,0:T(1,128)}', space=vmem, size = 0x12000, scoped, tag = 'internal scratch']
  %s0 = inlined_call_operand.hbm [shape: f32[16,128], index: 0, kind: input, shape index: {}]
  %s1 = inlined_call_operand.hbm [shape: f32[16,128], index: 1, kind: input, shape index: {}]
  %s2 = inlined_call_operand.hbm [shape: f32[16,128], index: 2, kind: output, shape index: {}]
  %s3 = sld [smem:[#allocation0]]
  $region26: #{tpu_custom_call.1} parent=0
    _
  %s5 = ssub.s32 1, %s3
  %s6 = scalar_select 0, %s5, %s3
  $region1: #{tpu_custom_call.1} parent=0
    #allocation2 [shape = 'u8[8192]{0}', space=vmem, size = 0x2000, scoped, tag = 'input window, operand 0, single buffered']
    #allocation3 [shape = 's32[1]{0}', space=sflag, size = 0x4, scoped, tag = 'scoped memory for tpu_custom_call.1']
    #allocation4 [shape = 's32[1]{0}', space=sflag, size = 0x4, scoped, tag = 'scoped memory for tpu_custom_call.1']
    #allocation5 [shape = 'u8[8192]{0}', space=vmem, size = 0x2000, scoped, tag = 'input window, operand 1, single buffered']
    #allocation6 [shape = 's32[1]{0}', space=sflag, size = 0x4, scoped, tag = 'scoped memory for tpu_custom_call.1']
    #allocation7 [shape = 'u8[8192]{0}', space=vmem, size = 0x2000, scoped, tag = 'output window, operand 0, single buffered']
    %7 = vsyncpa [#allocation3], 0
    %8 = vsyncpa [#allocation6], 0
    %9 = vsyncpa [#allocation4], 0
    // Predicated region
    $region2: #{tpu_custom_call.1} parent=1 // pred_check
      _
    $region3: #{tpu_custom_call.1} parent=1 // pred_check_branch
      %11 = sbr.rel (0) target = $region5
    $region4: #{tpu_custom_call.1} parent=1 // pred_region
      %s13 = ssub.s32 256, 256
      %14 = vsyncadd [#allocation3], %s13
      %s15 = sshll.u32 [#allocation2], 4
      %s16 = int_to_ptr.vmem [resolvable:$true] %s15
      %21 = dma.hbm_to_vmem [thread:$0]  %s0, 256, %s16, [#allocation3], 128, 128, 8
    $region5: #{tpu_custom_call.1} parent=1 // pred_fallthru
      _
    // Predicated region
    $region6: #{tpu_custom_call.1} parent=1 // pred_check
      _
    $region7: #{tpu_custom_call.1} parent=1 // pred_check_branch
      %23 = sbr.rel (0) target = $region9
    $region8: #{tpu_custom_call.1} parent=1 // pred_region
      %s25 = ssub.s32 256, 256
      %26 = vsyncadd [#allocation6], %s25
      %s27 = sshll.u32 [#allocation5], 4
      %s28 = int_to_ptr.vmem [resolvable:$true] %s27
      %33 = dma.hbm_to_vmem [thread:$0]  %s1, 256, %s28, [#allocation6], 128, 128, 8
    $region9: #{tpu_custom_call.1} parent=1 // pred_fallthru
      _
    // Predicated region
    $region10: #{tpu_custom_call.1} parent=1 // pred_check
      _
    $region11: #{tpu_custom_call.1} parent=1 // pred_check_branch
      %35 = sbr.rel (0) target = $region13
    $region12: #{tpu_custom_call.1} parent=1 // pred_region
      %36 = dma.done [#allocation3], 256
    $region13: #{tpu_custom_call.1} parent=1 // pred_fallthru
      _
    // Predicated region
    $region14: #{tpu_custom_call.1} parent=1 // pred_check
      _
    $region15: #{tpu_custom_call.1} parent=1 // pred_check_branch
      %38 = sbr.rel (0) target = $region17
    $region16: #{tpu_custom_call.1} parent=1 // pred_region
      %39 = dma.done [#allocation6], 256
    $region17: #{tpu_custom_call.1} parent=1 // pred_fallthru
      _
    %v40 = vld [vmem:[#allocation2] sm:$0xff]
    %v41 = vld [vmem:[#allocation2 + $0x8] sm:$0xff]
    %v42 = vmul.f32 %v40, %v40
    %v43 = vmul.f32 %v41, %v41
    %v44 = vadd.f32 %v42, %v43
    %45 = vadd.xlane.f32.xlu0 %v44
    %v46 = vpop.xlane.xlu0 %45
    %v47 = vrot.slane %v46, 4
    %v48 = vadd.f32 %v46, %v47
    %v49 = vrot.slane %v48, 2
    %v50 = vadd.f32 %v48, %v49
    %v51 = vrot.slane %v50, 1
    %v52 = vadd.f32 %v50, %v51
    %s53 = vtos %v52
    %v54 = vrcp.pop 2048.0
    %s55 = vtos %v54
    %s56 = smul.f32 %s53, %s55
    %v57 = vstv %s56
    %v58 = vrsqrt.pop %v57
    %s59 = vtos %v58
    %v60 = vstv %s59
    %v61 = vmul.f32 %v40, %v60
    %v62 = vmul.f32 %v41, %v60
    %v63 = vld [vmem:[#allocation5] sm:$0xff]
    %v64 = vld [vmem:[#allocation5 + $0x8] sm:$0xff]
    %v65 = vmul.f32 %v63, 0.4
    %v66 = vmul.f32 %v64, 0.4
    %v67 = vadd.f32 %v61, %v65
    %v68 = vadd.f32 %v62, %v66
    %69 = vst [vmem:[#allocation7] sm:$0xff] %v67
    %70 = vst [vmem:[#allocation7 + $0x8] sm:$0xff] %v68
    // Predicated region
    $region18: #{tpu_custom_call.1} parent=1 // pred_check
      _
    $region19: #{tpu_custom_call.1} parent=1 // pred_check_branch
      %72 = sbr.rel (0) target = $region21
    $region20: #{tpu_custom_call.1} parent=1 // pred_region
      %s74 = ssub.s32 256, 256
      %75 = vsyncadd [#allocation4], %s74
      %s76 = sshll.u32 [#allocation7], 4
      %s77 = int_to_ptr.vmem [resolvable:$true] %s76
      %82 = dma.vmem_to_hbm [thread:$0]  %s77, 256, %s2, [#allocation4], 128, 128, 8
    $region21: #{tpu_custom_call.1} parent=1 // pred_fallthru
      _
    // Predicated region
    $region22: #{tpu_custom_call.1} parent=1 // pred_check
      _
    $region23: #{tpu_custom_call.1} parent=1 // pred_check_branch
      %84 = sbr.rel (0) target = $region25
    $region24: #{tpu_custom_call.1} parent=1 // pred_region
      %85 = dma.done [#allocation4], 256
    $region25: #{tpu_custom_call.1} parent=1 // pred_fallthru
      _
    %86 = vsyncpa [#allocation3], 1
    %87 = vsyncpa [#allocation6], 1
    %88 = vsyncpa [#allocation4], 1

</llo_original>
